<compile_context>
chip_gen: v6e
topology: v6e:2x2x1
jax: 0.10.0
libtpu: 0.0.40
codegen_flags: <defaults>
</compile_context>

<pallas_src>
import functools

import jax
import jax.numpy as jnp
from jax.experimental import pallas as pl
from jax.experimental.pallas import tpu as pltpu


def _round_up(n: int, m: int) -> int:
    return ((n + m - 1) // m) * m


def _make_encoder_kernel(mxu_dtype):
    def kernel(x_ref, w1_ref, b1_ref, w2_ref, b2_ref, o_ref):
        # Layer 1: Linear + ReLU. MXU matmul with bf16 operands, f32 accumulate.
        x = x_ref[...]
        h = jnp.dot(
            x.astype(mxu_dtype),
            w1_ref[...].astype(mxu_dtype),
            preferred_element_type=jnp.float32,
        )
        h = jnp.maximum(h + b1_ref[...], 0.0)  # bias (1, H1) broadcasts, f32 VPU

        # Layer 2: Linear + ReLU.
        o = jnp.dot(
            h.astype(mxu_dtype),
            w2_ref[...].astype(mxu_dtype),
            preferred_element_type=jnp.float32,
        )
        o = jnp.maximum(o + b2_ref[...], 0.0)
        o_ref[...] = o.astype(o_ref.dtype)

    return kernel


@functools.partial(jax.jit, static_argnames=("block_b", "use_bf16_mxu"))
def vector_encoder_forward(x, w1, b1, w2, b2, *, block_b=256, use_bf16_mxu=True):
    """Fused 2-layer MLP (Linear+ReLU twice) as a single batch-tiled Pallas kernel.

    x : (B, D_in) f32
    w1: (D_in, H1) f32, b1: (H1,)
    w2: (H1, H2)  f32, b2: (H2,)
    returns (B, H2) f32
    """
    B, D_in = x.shape
    H1 = w1.shape[1]
    H2 = w2.shape[1]

    # Lane-dense feature dims (multiples of 128); batch tile multiple of 8 sublanes.
    Dp = _round_up(D_in, 128)
    H1p = _round_up(H1, 128)
    H2p = _round_up(H2, 128)
    TB = min(block_b, _round_up(B, 8))
    Bp = _round_up(B, TB)
    num_tiles = Bp // TB

    # Zero-pad in the wrapper: padded columns/rows contribute exactly zero to
    # the matmuls and ReLU(0)=0, so sliced output is bit-identical in intent.
    xp = jnp.zeros((Bp, Dp), jnp.float32).at[:B, :D_in].set(x)
    w1p = jnp.zeros((Dp, H1p), jnp.float32).at[:D_in, :H1].set(w1)
    b1p = jnp.zeros((1, H1p), jnp.float32).at[0, :H1].set(b1)
    w2p = jnp.zeros((H1p, H2p), jnp.float32).at[:H1, :H2].set(w2)
    b2p = jnp.zeros((1, H2p), jnp.float32).at[0, :H2].set(b2)

    mxu_dtype = jnp.bfloat16 if use_bf16_mxu else jnp.float32
    kernel = _make_encoder_kernel(mxu_dtype)

    cost = pl.CostEstimate(
        flops=2 * Bp * (Dp * H1p + H1p * H2p),
        transcendentals=0,
        bytes_accessed=4 * (Bp * Dp + Dp * H1p + H1p * H2p + H1p + H2p + Bp * H2p),
    )

    # VMEM budget (f32): double-buffered x/out tiles + resident weights/biases
    # + live intermediates; only raise the scoped limit when actually needed
    # (keeps us safe on v7x's 64 MiB physical VMEM).
    vmem_est = 4 * (
        2 * TB * Dp + 2 * TB * H2p + Dp * H1p + H1p * H2p + H1p + H2p + 2 * TB * H1p
    )
    compiler_params = dict(dimension_semantics=("parallel",))
    if vmem_est > (32 << 20):
        compiler_params["vmem_limit_bytes"] = min(int(vmem_est * 2), 100 << 20)

    out_padded = pl.pallas_call(
        kernel,
        out_shape=jax.ShapeDtypeStruct((Bp, H2p), jnp.float32),
        grid=(num_tiles,),
        in_specs=[
            pl.BlockSpec((TB, Dp), lambda i: (i, 0)),      # x: tiled over batch
            pl.BlockSpec((Dp, H1p), lambda i: (0, 0)),     # W1: resident
            pl.BlockSpec((1, H1p), lambda i: (0, 0)),      # b1: resident
            pl.BlockSpec((H1p, H2p), lambda i: (0, 0)),    # W2: resident
            pl.BlockSpec((1, H2p), lambda i: (0, 0)),      # b2: resident
        ],
        out_specs=pl.BlockSpec((TB, H2p), lambda i: (i, 0)),
        compiler_params=pltpu.CompilerParams(**compiler_params),
        cost_estimate=cost,
    )(xp, w1p, b1p, w2p, b2p)

    return out_padded[:B, :H2]


def _init_linear(key, in_units, out_units):
    # Deterministic PyTorch-style init: U(-1/sqrt(in), 1/sqrt(in))
    kw, kb = jax.random.split(key)
    bound = 1.0 / jnp.sqrt(jnp.float32(in_units))
    w = jax.random.uniform(kw, (in_units, out_units), jnp.float32, -bound, bound)
    b = jax.random.uniform(kb, (out_units,), jnp.float32, -bound, bound)
    return w, b


if __name__ == "__main__":
    # Small synthetic config: VectorEncoder(observation_shape=(32,), hidden_units=[32, 64]).
    batch = 8
    obs_dim = 32
    hidden_units = [32, 64]

    key = jax.random.PRNGKey(0)
    kx, k1, k2 = jax.random.split(key, 3)

    x = jax.random.normal(kx, (batch, obs_dim), jnp.float32)
    w1, b1 = _init_linear(k1, obs_dim, hidden_units[0])
    w2, b2 = _init_linear(k2, hidden_units[0], hidden_units[1])

    out = vector_encoder_forward(x, w1, b1, w2, b2)
    out = jax.block_until_ready(out)

    # Pure-JAX f32 reference (same semantics as the PyTorch module).
    ref = jnp.maximum(jnp.maximum(x @ w1 + b1, 0.0) @ w2 + b2, 0.0)
    assert out.shape == (batch, hidden_units[-1])
    # bf16 MXU operands with f32 accumulation -> relax tolerance vs pure f32.
    assert jnp.allclose(out, ref, atol=2e-2, rtol=2e-2), (
        float(jnp.max(jnp.abs(out - ref)))
    )

    print("KERNEL_OK")
</pallas_src>

<mosaic_0001>
module attributes {stable_mosaic.version = 11 : i64} {
  func.func @kernel(%arg0: i32, %arg1: memref<8x128xf32, #tpu.memory_space<vmem>>, %arg2: memref<128x128xf32, #tpu.memory_space<vmem>>, %arg3: memref<1x128xf32, #tpu.memory_space<vmem>>, %arg4: memref<128x128xf32, #tpu.memory_space<vmem>>, %arg5: memref<1x128xf32, #tpu.memory_space<vmem>>, %arg6: memref<8x128xf32, #tpu.memory_space<vmem>>) attributes {dimension_semantics = [#tpu.dimension_semantics<parallel>], iteration_bounds = array<i64: 1>, scalar_prefetch = 0 : i64, scratch_operands = 0 : i64, tpu.core_type = #tpu.core_type<tc>, window_params = [{transform_indices = @transform_0, window_bounds = array<i64: 8, 128>}, {pipeline_mode = #tpu.pipeline_mode<synchronous>, transform_indices = @transform_1, window_bounds = array<i64: 128, 128>}, {pipeline_mode = #tpu.pipeline_mode<synchronous>, transform_indices = @transform_2, window_bounds = array<i64: 1, 128>}, {pipeline_mode = #tpu.pipeline_mode<synchronous>, transform_indices = @transform_3, window_bounds = array<i64: 128, 128>}, {pipeline_mode = #tpu.pipeline_mode<synchronous>, transform_indices = @transform_4, window_bounds = array<i64: 1, 128>}, {transform_indices = @transform_5, window_bounds = array<i64: 8, 128>}]} {
    %c0 = arith.constant 0 : index
    %c0_0 = arith.constant 0 : index
    %0 = vector.load %arg1[%c0, %c0_0] : memref<8x128xf32, #tpu.memory_space<vmem>>, vector<8x128xf32>
    %1 = arith.truncf %0 : vector<8x128xf32> to vector<8x128xbf16>
    %c0_1 = arith.constant 0 : index
    %c0_2 = arith.constant 0 : index
    %2 = vector.load %arg2[%c0_1, %c0_2] : memref<128x128xf32, #tpu.memory_space<vmem>>, vector<128x128xf32>
    %3 = arith.truncf %2 : vector<128x128xf32> to vector<128x128xbf16>
    %cst = arith.constant dense<0.000000e+00> : vector<8x128xf32>
    %4 = tpu.matmul %1, %3, %cst {dimension_numbers = #tpu.dot_dimension_numbers<[1], [0], [0], [1], [0, 0, 1, 1], [], []>} : vector<8x128xbf16>, vector<128x128xbf16>, vector<8x128xf32> -> vector<8x128xf32>
    %c0_3 = arith.constant 0 : index
    %c0_4 = arith.constant 0 : index
    %5 = vector.load %arg3[%c0_3, %c0_4] : memref<1x128xf32, #tpu.memory_space<vmem>>, vector<1x128xf32>
    %6 = vector.broadcast %5 : vector<1x128xf32> to vector<8x128xf32>
    %7 = arith.addf %4, %6 : vector<8x128xf32>
    %cst_5 = arith.constant 0.000000e+00 : f32
    %8 = vector.broadcast %cst_5 : f32 to vector<8x128xf32>
    %9 = arith.maximumf %7, %8 : vector<8x128xf32>
    %10 = arith.truncf %9 : vector<8x128xf32> to vector<8x128xbf16>
    %c0_6 = arith.constant 0 : index
    %c0_7 = arith.constant 0 : index
    %11 = vector.load %arg4[%c0_6, %c0_7] : memref<128x128xf32, #tpu.memory_space<vmem>>, vector<128x128xf32>
    %12 = arith.truncf %11 : vector<128x128xf32> to vector<128x128xbf16>
    %cst_8 = arith.constant dense<0.000000e+00> : vector<8x128xf32>
    %13 = tpu.matmul %10, %12, %cst_8 {dimension_numbers = #tpu.dot_dimension_numbers<[1], [0], [0], [1], [0, 0, 1, 1], [], []>} : vector<8x128xbf16>, vector<128x128xbf16>, vector<8x128xf32> -> vector<8x128xf32>
    %c0_9 = arith.constant 0 : index
    %c0_10 = arith.constant 0 : index
    %14 = vector.load %arg5[%c0_9, %c0_10] : memref<1x128xf32, #tpu.memory_space<vmem>>, vector<1x128xf32>
    %15 = vector.broadcast %14 : vector<1x128xf32> to vector<8x128xf32>
    %16 = arith.addf %13, %15 : vector<8x128xf32>
    %cst_11 = arith.constant 0.000000e+00 : f32
    %17 = vector.broadcast %cst_11 : f32 to vector<8x128xf32>
    %18 = arith.maximumf %16, %17 : vector<8x128xf32>
    %c0_12 = arith.constant 0 : index
    %c0_13 = arith.constant 0 : index
    %19 = vector.load %arg6[%c0_12, %c0_13] : memref<8x128xf32, #tpu.memory_space<vmem>>, vector<8x128xf32>
    tpu.vector_store %arg6[%c0_12, %c0_13], %18 {strides = array<i32>} : memref<8x128xf32, #tpu.memory_space<vmem>>, vector<8x128xf32>,
    return
  }
  func.func @transform_0(%arg0: i32) -> (i32, i32) {
    %c0_i32 = arith.constant 0 : i32
    %c0_i32_0 = arith.constant 0 : i32
    return %arg0, %c0_i32 : i32, i32
  }
  func.func @transform_1(%arg0: i32) -> (i32, i32) {
    %c0_i32 = arith.constant 0 : i32
    %c0_i32_0 = arith.constant 0 : i32
    %c0_i32_1 = arith.constant 0 : i32
    return %c0_i32, %c0_i32_0 : i32, i32
  }
  func.func @transform_2(%arg0: i32) -> (i32, i32) {
    %c0_i32 = arith.constant 0 : i32
    %c0_i32_0 = arith.constant 0 : i32
    %c0_i32_1 = arith.constant 0 : i32
    return %c0_i32, %c0_i32_0 : i32, i32
  }
  func.func @transform_3(%arg0: i32) -> (i32, i32) {
    %c0_i32 = arith.constant 0 : i32
    %c0_i32_0 = arith.constant 0 : i32
    %c0_i32_1 = arith.constant 0 : i32
    return %c0_i32, %c0_i32_0 : i32, i32
  }
  func.func @transform_4(%arg0: i32) -> (i32, i32) {
    %c0_i32 = arith.constant 0 : i32
    %c0_i32_0 = arith.constant 0 : i32
    %c0_i32_1 = arith.constant 0 : i32
    return %c0_i32, %c0_i32_0 : i32, i32
  }
  func.func @transform_5(%arg0: i32) -> (i32, i32) {
    %c0_i32 = arith.constant 0 : i32
    %c0_i32_0 = arith.constant 0 : i32
    return %arg0, %c0_i32 : i32, i32
  }
}

</mosaic_0001>

<llo_original>
// kernel: vector_encoder_forward.1
$region0: #{vector_encoder_forward.1}
  #allocation0 [shape = 'u32[]', space=smem, size = 0x4, offset = 0x4, fixed_abs, tag = 'smem constant byte address 0x4 - core index']
  #allocation1 [shape = 'u32[144,128]{1,0:T(1,128)}', space=vmem, size = 0x12000, scoped, tag = 'internal scratch']
  %s0 = inlined_call_operand.vmem [shape: f32[8,128], index: 0, kind: input, shape index: {}]
  %s1 = inlined_call_operand.vmem [shape: f32[128,128], index: 1, kind: input, shape index: {}]
  %s2 = inlined_call_operand.vmem [shape: f32[1,128], index: 2, kind: input, shape index: {}]
  %s3 = inlined_call_operand.vmem [shape: f32[128,128], index: 3, kind: input, shape index: {}]
  %s4 = inlined_call_operand.vmem [shape: f32[1,128], index: 4, kind: input, shape index: {}]
  %s5 = inlined_call_operand.hbm [shape: f32[8,128], index: 5, kind: output, shape index: {}]
  %s6 = sld [smem:[#allocation0]]
  $region30: #{vector_encoder_forward.1} parent=0
    _
  %s8 = ssub.s32 1, %s6
  %s9 = scalar_select 0, %s8, %s6
  $region1: #{vector_encoder_forward.1} parent=0
    #allocation2 [shape = 'u8[4096]{0}', space=vmem, size = 0x1000, scoped, tag = 'output window, operand 0, single buffered']
    #allocation3 [shape = 's32[1]{0}', space=sflag, size = 0x4, scoped, tag = 'scoped memory for vector_encoder_forward.1']
    %10 = vsyncpa [#allocation3], 0
    // Predicated region
    $region2: #{vector_encoder_forward.1} parent=1 // pred_check
      _
    $region3: #{vector_encoder_forward.1} parent=1 // pred_check_branch
      %12 = sbr.rel (0) target = $region5
    $region4: #{vector_encoder_forward.1} parent=1 // pred_region
      _
    $region5: #{vector_encoder_forward.1} parent=1 // pred_fallthru
      _
    // Predicated region
    $region6: #{vector_encoder_forward.1} parent=1 // pred_check
      _
    $region7: #{vector_encoder_forward.1} parent=1 // pred_check_branch
      %14 = sbr.rel (0) target = $region9
    $region8: #{vector_encoder_forward.1} parent=1 // pred_region
      _
    $region9: #{vector_encoder_forward.1} parent=1 // pred_fallthru
      _
    // Predicated region
    $region10: #{vector_encoder_forward.1} parent=1 // pred_check
      _
    $region11: #{vector_encoder_forward.1} parent=1 // pred_check_branch
      %16 = sbr.rel (0) target = $region13
    $region12: #{vector_encoder_forward.1} parent=1 // pred_region
      _
    $region13: #{vector_encoder_forward.1} parent=1 // pred_fallthru
      _
    // Predicated region
    $region14: #{vector_encoder_forward.1} parent=1 // pred_check
      _
    $region15: #{vector_encoder_forward.1} parent=1 // pred_check_branch
      %18 = sbr.rel (0) target = $region17
    $region16: #{vector_encoder_forward.1} parent=1 // pred_region
      _
    $region17: #{vector_encoder_forward.1} parent=1 // pred_fallthru
      _
    // Predicated region
    $region18: #{vector_encoder_forward.1} parent=1 // pred_check
      _
    $region19: #{vector_encoder_forward.1} parent=1 // pred_check_branch
      %20 = sbr.rel (0) target = $region21
    $region20: #{vector_encoder_forward.1} parent=1 // pred_region
      _
    $region21: #{vector_encoder_forward.1} parent=1 // pred_fallthru
      _
    %v22 = vld [vmem:[%s0] sm:$0xff]
    %v23 = vpack.c.bf16 %v22, %v22
    %v24 = vld [vmem:[%s1] sm:$0xff]
    %v25 = vld [vmem:[%s1 + $0x8] sm:$0xff]
    %v26 = vld [vmem:[%s1 + $0x10] sm:$0xff]
    %v27 = vld [vmem:[%s1 + $0x18] sm:$0xff]
    %v28 = vld [vmem:[%s1 + $0x20] sm:$0xff]
    %v29 = vld [vmem:[%s1 + $0x28] sm:$0xff]
    %v30 = vld [vmem:[%s1 + $0x30] sm:$0xff]
    %v31 = vld [vmem:[%s1 + $0x38] sm:$0xff]
    %v32 = vld [vmem:[%s1 + $0x40] sm:$0xff]
    %v33 = vld [vmem:[%s1 + $0x48] sm:$0xff]
    %v34 = vld [vmem:[%s1 + $0x50] sm:$0xff]
    %v35 = vld [vmem:[%s1 + $0x58] sm:$0xff]
    %v36 = vld [vmem:[%s1 + $0x60] sm:$0xff]
    %v37 = vld [vmem:[%s1 + $0x68] sm:$0xff]
    %v38 = vld [vmem:[%s1 + $0x70] sm:$0xff]
    %v39 = vld [vmem:[%s1 + $0x78] sm:$0xff]
    %v40 = vpack.c.bf16 %v25, %v24
    %v41 = vpack.c.bf16 %v27, %v26
    %v42 = vpack.c.bf16 %v29, %v28
    %v43 = vpack.c.bf16 %v31, %v30
    %v44 = vpack.c.bf16 %v33, %v32
    %v45 = vpack.c.bf16 %v35, %v34
    %v46 = vpack.c.bf16 %v37, %v36
    %v47 = vpack.c.bf16 %v39, %v38
    %v48 = vld [vmem:[%s2] sm:$0x1]
    %v50 = vlaneseq
    %v51 = vshrl.u32 %v50, 7
    %v52 = vsub.s32 0, %v51
    %v53 = vrot.slane %v48, %v52
    %55 = vmatprep.subr.bf16.mxu0 0
    %56 = vmatpush1.bf16.msra.mxu0 %v47
    %57 = vmatprep.subr.bf16.mxu0 0
    %58 = vmatpush1.bf16.msra.mxu0 %v46
    %59 = vmatprep.subr.bf16.mxu0 0
    %60 = vmatpush1.bf16.msra.mxu0 %v45
    %61 = vmatprep.subr.bf16.mxu0 0
    %62 = vmatpush1.bf16.msra.mxu0 %v44
    %63 = vmatprep.subr.bf16.mxu0 0
    %64 = vmatpush1.bf16.msra.mxu0 %v43
    %65 = vmatprep.subr.bf16.mxu0 0
    %66 = vmatpush1.bf16.msra.mxu0 %v42
    %67 = vmatprep.subr.bf16.mxu0 0
    %68 = vmatpush1.bf16.msra.mxu0 %v41
    %69 = vmatprep.subr.bf16.mxu0 0
    %70 = vmatpush1.bf16.msra.mxu0 %v40
    %71 = vmatprep.subr.bf16.mxu0 0
    %72 = vmatpush2.bf16.msra.mxu0 0
    %73 = vmatprep.subr.bf16.mxu0 0
    %74 = vmatpush2.bf16.msra.mxu0 0
    %75 = vmatprep.subr.bf16.mxu0 0
    %76 = vmatpush2.bf16.msra.mxu0 0
    %77 = vmatprep.subr.bf16.mxu0 0
    %78 = vmatpush2.bf16.msra.mxu0 0
    %79 = vmatprep.subr.bf16.mxu0 0
    %80 = vmatpush2.bf16.msra.mxu0 0
    %81 = vmatprep.subr.bf16.mxu0 0
    %82 = vmatpush2.bf16.msra.mxu0 0
    %83 = vmatprep.subr.bf16.mxu0 0
    %84 = vmatpush2.bf16.msra.mxu0 0
    %85 = vmatprep.subr.bf16.mxu0 0
    %86 = vmatpush2.bf16.msra.mxu0 0
    %87 = vmatprep.mubr.bf16.mxu0 0
    %88 = vmatmul.mubr.bf16.gmra.mxu0 %v23
    %v89 = vpop.f32.mrf.mxu0
    %v90 = vadd.f32 %v53, %v89
    %v91 = vpop.f32.mrf.mxu0
    %v92 = vpop.f32.mrf.mxu0
    %v93 = vpop.f32.mrf.mxu0
    %94 = vdwg.mxu0
    %v95 = vmax.f32 %v90, 0.0
    %v96 = vpack.c.bf16 %v95, %v95
    %v97 = vld [vmem:[%s3] sm:$0xff]
    %v98 = vld [vmem:[%s3 + $0x8] sm:$0xff]
    %v99 = vld [vmem:[%s3 + $0x10] sm:$0xff]
    %v100 = vld [vmem:[%s3 + $0x18] sm:$0xff]
    %v101 = vld [vmem:[%s3 + $0x20] sm:$0xff]
    %v102 = vld [vmem:[%s3 + $0x28] sm:$0xff]
    %v103 = vld [vmem:[%s3 + $0x30] sm:$0xff]
    %v104 = vld [vmem:[%s3 + $0x38] sm:$0xff]
    %v105 = vld [vmem:[%s3 + $0x40] sm:$0xff]
    %v106 = vld [vmem:[%s3 + $0x48] sm:$0xff]
    %v107 = vld [vmem:[%s3 + $0x50] sm:$0xff]
    %v108 = vld [vmem:[%s3 + $0x58] sm:$0xff]
    %v109 = vld [vmem:[%s3 + $0x60] sm:$0xff]
    %v110 = vld [vmem:[%s3 + $0x68] sm:$0xff]
    %v111 = vld [vmem:[%s3 + $0x70] sm:$0xff]
    %v112 = vld [vmem:[%s3 + $0x78] sm:$0xff]
    %v113 = vpack.c.bf16 %v98, %v97
    %v114 = vpack.c.bf16 %v100, %v99
    %v115 = vpack.c.bf16 %v102, %v101
    %v116 = vpack.c.bf16 %v104, %v103
    %v117 = vpack.c.bf16 %v106, %v105
    %v118 = vpack.c.bf16 %v108, %v107
    %v119 = vpack.c.bf16 %v110, %v109
    %v120 = vpack.c.bf16 %v112, %v111
    %v121 = vld [vmem:[%s4] sm:$0x1]
    %v123 = vlaneseq
    %v124 = vshrl.u32 %v123, 7
    %v125 = vsub.s32 0, %v124
    %v126 = vrot.slane %v121, %v125
    %128 = vmatprep.subr.bf16.mxu0 0
    %129 = vmatpush1.bf16.msra.mxu0 %v120
    %130 = vmatprep.subr.bf16.mxu0 0
    %131 = vmatpush1.bf16.msra.mxu0 %v119
    %132 = vmatprep.subr.bf16.mxu0 0
    %133 = vmatpush1.bf16.msra.mxu0 %v118
    %134 = vmatprep.subr.bf16.mxu0 0
    %135 = vmatpush1.bf16.msra.mxu0 %v117
    %136 = vmatprep.subr.bf16.mxu0 0
    %137 = vmatpush1.bf16.msra.mxu0 %v116
    %138 = vmatprep.subr.bf16.mxu0 0
    %139 = vmatpush1.bf16.msra.mxu0 %v115
    %140 = vmatprep.subr.bf16.mxu0 0
    %141 = vmatpush1.bf16.msra.mxu0 %v114
    %142 = vmatprep.subr.bf16.mxu0 0
    %143 = vmatpush1.bf16.msra.mxu0 %v113
    %144 = vmatprep.subr.bf16.mxu0 0
    %145 = vmatpush2.bf16.msra.mxu0 0
    %146 = vmatprep.subr.bf16.mxu0 0
    %147 = vmatpush2.bf16.msra.mxu0 0
    %148 = vmatprep.subr.bf16.mxu0 0
    %149 = vmatpush2.bf16.msra.mxu0 0
    %150 = vmatprep.subr.bf16.mxu0 0
    %151 = vmatpush2.bf16.msra.mxu0 0
    %152 = vmatprep.subr.bf16.mxu0 0
    %153 = vmatpush2.bf16.msra.mxu0 0
    %154 = vmatprep.subr.bf16.mxu0 0
    %155 = vmatpush2.bf16.msra.mxu0 0
    %156 = vmatprep.subr.bf16.mxu0 0
    %157 = vmatpush2.bf16.msra.mxu0 0
    %158 = vmatprep.subr.bf16.mxu0 0
    %159 = vmatpush2.bf16.msra.mxu0 0
    %160 = vmatprep.mubr.bf16.mxu0 0
    %161 = vmatmul.mubr.bf16.gmra.mxu0 %v96
    %v162 = vpop.f32.mrf.mxu0
    %v163 = vadd.f32 %v126, %v162
    %v164 = vpop.f32.mrf.mxu0
    %v165 = vpop.f32.mrf.mxu0
    %v166 = vpop.f32.mrf.mxu0
    %167 = vdwg.mxu0
    %v168 = vmax.f32 %v163, 0.0
    %169 = vst [vmem:[#allocation2] sm:$0xff] %v168
    // Predicated region
    $region22: #{vector_encoder_forward.1} parent=1 // pred_check
      _
    $region23: #{vector_encoder_forward.1} parent=1 // pred_check_branch
      %171 = sbr.rel (0) target = $region25
    $region24: #{vector_encoder_forward.1} parent=1 // pred_region
      %s173 = ssub.s32 128, 128
      %174 = vsyncadd [#allocation3], %s173
      %s176 = sshll.u32 [#allocation2], 4
      %s177 = int_to_ptr.vmem [resolvable:$true] %s176
      %179 = dma.vmem_to_hbm [thread:$0]  %s177, 128, %s5, [#allocation3]
    $region25: #{vector_encoder_forward.1} parent=1 // pred_fallthru
      _
    // Predicated region
    $region26: #{vector_encoder_forward.1} parent=1 // pred_check
      _
    $region27: #{vector_encoder_forward.1} parent=1 // pred_check_branch
      %181 = sbr.rel (0) target = $region29
    $region28: #{vector_encoder_forward.1} parent=1 // pred_region
      %182 = dma.done [#allocation3], 128
    $region29: #{vector_encoder_forward.1} parent=1 // pred_fallthru
      _
    %183 = vsyncpa [#allocation3], 1

</llo_original>
